<compile_context>
chip_gen: v6e
topology: v6e:2x2x1
jax: 0.10.0
libtpu: 0.0.40
codegen_flags: <defaults>
</compile_context>

<pallas_src>
import jax
import jax.numpy as jnp
from jax.experimental import pallas as pl
from jax.experimental.pallas import tpu as pltpu


# ---------------------------------------------------------------------------
# Kernel
# ---------------------------------------------------------------------------
def _lstm_cell_kernel(hx_ref, c_ref, w_ref, b_ref, c_out_ref, h_out_ref):
    """One fused gate matmul + elementwise LSTM update for one batch tile.

    hx_ref : (Bt, H+I)   [h | x] concatenated on the lane axis
    c_ref  : (Bt, H)     previous cell state (f32)
    w_ref  : (H+I, 4H)   fused weight [Wfh^T|Wwh^T|Wih^T|Wch^T ; Wfx^T|...]
    b_ref  : (1, 4H)     fused bias   [Bf | Bw | Bi | Bc]
    """
    H = c_ref.shape[-1]

    # Single MXU push; cast the activation to the weight dtype (bf16 on
    # v6e/v7x path), accumulate in f32.
    hx = hx_ref[...].astype(w_ref.dtype)
    gates = (
        jnp.dot(hx, w_ref[...], preferred_element_type=jnp.float32)
        + b_ref[...]                      # one broadcast add for all 4 gates
    )

    c = c_ref[...]
    forget_g = jax.nn.sigmoid(gates[:, 0 * H:1 * H])   # weighted_forget
    inputw_g = jax.nn.sigmoid(gates[:, 1 * H:2 * H])   # input_weight
    input_g  = jnp.tanh(gates[:, 2 * H:3 * H])         # input
    output_g = jax.nn.sigmoid(gates[:, 3 * H:4 * H])   # memory_weight

    c_new = c * forget_g + inputw_g * input_g
    c_out_ref[...] = c_new
    h_out_ref[...] = jnp.tanh(c_new) * output_g


# ---------------------------------------------------------------------------
# One-time parameter preparation (do NOT call per step)
# ---------------------------------------------------------------------------
def prepare_lstm_params(params, weight_dtype=jnp.float32):
    """Build the fused, pre-transposed weight (H+I, 4H) and bias (1, 4H).

    Gate order along the 4H axis: [forget, input_weight, input, memory_weight].
    Row order: first H rows multiply h, next I rows multiply x  (matches the
    [h | x] concatenation in the wrapper).
    """
    wh = jnp.concatenate(
        [params["Wfh"].T, params["Wwh"].T, params["Wih"].T, params["Wch"].T],
        axis=1)                                            # (H, 4H)
    wx = jnp.concatenate(
        [params["Wfx"].T, params["Wwx"].T, params["Wix"].T, params["Wcx"].T],
        axis=1)                                            # (I, 4H)
    w_all = jnp.concatenate([wh, wx], axis=0).astype(weight_dtype)  # (H+I, 4H)
    b_all = jnp.concatenate(
        [params["Bf"], params["Bw"], params["Bi"], params["Bc"]]
    ).reshape(1, -1).astype(jnp.float32)                   # (1, 4H)
    return w_all, b_all


# ---------------------------------------------------------------------------
# Wrapper
# ---------------------------------------------------------------------------
def _pick_batch_tile(batch):
    for bt in (512, 256, 128):
        if batch % bt == 0:
            return bt
    return batch


def lstm_cell_pallas(c, h, x, w_all, b_all):
    """c, h: (B, H) f32.  x: (B, I) f32.  w_all: (H+I, 4H).  b_all: (1, 4H)."""
    B, H = c.shape
    HI = w_all.shape[0]
    G4 = w_all.shape[1]

    hx = jnp.concatenate([h, x], axis=1)          # (B, H+I) — data, per-call

    bt = _pick_batch_tile(B)
    grid = (B // bt,)

    out_shapes = (
        jax.ShapeDtypeStruct((B, H), jnp.float32),
        jax.ShapeDtypeStruct((B, H), jnp.float32),
    )

    return pl.pallas_call(
        _lstm_cell_kernel,
        out_shape=out_shapes,
        grid=grid,
        in_specs=[
            pl.BlockSpec((bt, HI), lambda i: (i, 0)),   # [h|x] batch tile
            pl.BlockSpec((bt, H), lambda i: (i, 0)),    # c batch tile
            pl.BlockSpec((HI, G4), lambda i: (0, 0)),   # weights: VMEM-resident
            pl.BlockSpec((1, G4), lambda i: (0, 0)),    # bias:    VMEM-resident
        ],
        out_specs=(
            pl.BlockSpec((bt, H), lambda i: (i, 0)),
            pl.BlockSpec((bt, H), lambda i: (i, 0)),
        ),
        compiler_params=pltpu.CompilerParams(
            dimension_semantics=("parallel",),
        ),
    )(hx, c, w_all, b_all)


lstm_cell_pallas_jit = jax.jit(lstm_cell_pallas)


# ---------------------------------------------------------------------------
# Pure-JAX reference (mirrors the PyTorch forward exactly)
# ---------------------------------------------------------------------------
def lstm_cell_ref(c, h, x, p):
    def gate(Wh, Wx, B):
        return jnp.einsum("xy,ay->ax", Wh, h) + x @ Wx.T + B[None, :]

    weighted_forget = gate(p["Wfh"], p["Wfx"], p["Bf"])
    input_weight = gate(p["Wwh"], p["Wwx"], p["Bw"])
    input_ = gate(p["Wih"], p["Wix"], p["Bi"])
    memory_weight = gate(p["Wch"], p["Wcx"], p["Bc"])
    forgeted_c = c * jax.nn.sigmoid(weighted_forget)
    input_inject = jax.nn.sigmoid(input_weight) * jnp.tanh(input_)
    c_new = forgeted_c + input_inject
    short_memory = jnp.tanh(c_new) * jax.nn.sigmoid(memory_weight)
    return c_new, short_memory


# ---------------------------------------------------------------------------
if __name__ == "__main__":
    batch = 8
    hidden_size = 32
    input_size = 16

    key = jax.random.PRNGKey(0)
    keys = jax.random.split(key, 16)

    def w(k, shape):
        return jax.random.normal(k, shape, dtype=jnp.float32) * 0.1

    params = {
        "Wfh": w(keys[0], (hidden_size, hidden_size)),
        "Wfx": w(keys[1], (hidden_size, input_size)),
        "Bf": w(keys[2], (hidden_size,)),
        "Wwh": w(keys[3], (hidden_size, hidden_size)),
        "Wwx": w(keys[4], (hidden_size, input_size)),
        "Bw": w(keys[5], (hidden_size,)),
        "Wih": w(keys[6], (hidden_size, hidden_size)),
        "Wix": w(keys[7], (hidden_size, input_size)),
        "Bi": w(keys[8], (hidden_size,)),
        "Wch": w(keys[9], (hidden_size, hidden_size)),
        "Wcx": w(keys[10], (hidden_size, input_size)),
        "Bc": w(keys[11], (hidden_size,)),
    }

    c0 = jax.random.normal(keys[12], (batch, hidden_size), dtype=jnp.float32)
    h0 = jax.random.normal(keys[13], (batch, hidden_size), dtype=jnp.float32)
    x = jax.random.normal(keys[14], (batch, input_size), dtype=jnp.float32)

    c_ref, h_ref = lstm_cell_ref(c0, h0, x, params)

    # --- f32 weight path (exact, strict tolerance) ---------------------------
    w_f32, b_f32 = prepare_lstm_params(params, jnp.float32)
    c_new, h_new = lstm_cell_pallas_jit(c0, h0, x, w_f32, b_f32)
    jax.block_until_ready((c_new, h_new))
    assert jnp.allclose(c_new, c_ref, atol=1e-5, rtol=1e-5), "c mismatch (f32)"
    assert jnp.allclose(h_new, h_ref, atol=1e-5, rtol=1e-5), "h mismatch (f32)"

    # --- bf16 weight path (MXU-native on v6e/v7x, loosened tolerance) --------
    w_bf16, b_bf16 = prepare_lstm_params(params, jnp.bfloat16)
    c_bf, h_bf = lstm_cell_pallas_jit(c0, h0, x, w_bf16, b_bf16)
    jax.block_until_ready((c_bf, h_bf))
    assert jnp.allclose(c_bf, c_ref, atol=3e-2, rtol=3e-2), "c mismatch (bf16)"
    assert jnp.allclose(h_bf, h_ref, atol=3e-2, rtol=3e-2), "h mismatch (bf16)"

    print("KERNEL_OK")
</pallas_src>

<mosaic_0001>
module attributes {stable_mosaic.version = 11 : i64} {
  func.func @_lstm_cell_kernel(%arg0: i32, %arg1: memref<8x48xf32, #tpu.memory_space<vmem>>, %arg2: memref<8x32xf32, #tpu.memory_space<vmem>>, %arg3: memref<48x128xf32, #tpu.memory_space<vmem>>, %arg4: memref<1x128xf32, #tpu.memory_space<vmem>>, %arg5: memref<8x32xf32, #tpu.memory_space<vmem>>, %arg6: memref<8x32xf32, #tpu.memory_space<vmem>>) attributes {dimension_semantics = [#tpu.dimension_semantics<parallel>], iteration_bounds = array<i64: 1>, scalar_prefetch = 0 : i64, scratch_operands = 0 : i64, tpu.core_type = #tpu.core_type<tc>, window_params = [{transform_indices = @transform_0, window_bounds = array<i64: 8, 48>}, {transform_indices = @transform_1, window_bounds = array<i64: 8, 32>}, {pipeline_mode = #tpu.pipeline_mode<synchronous>, transform_indices = @transform_2, window_bounds = array<i64: 48, 128>}, {pipeline_mode = #tpu.pipeline_mode<synchronous>, transform_indices = @transform_3, window_bounds = array<i64: 1, 128>}, {transform_indices = @transform_4, window_bounds = array<i64: 8, 32>}, {transform_indices = @transform_5, window_bounds = array<i64: 8, 32>}]} {
    %c0 = arith.constant 0 : index
    %c0_0 = arith.constant 0 : index
    %0 = vector.load %arg1[%c0, %c0_0] : memref<8x48xf32, #tpu.memory_space<vmem>>, vector<8x48xf32>
    %c0_1 = arith.constant 0 : index
    %c0_2 = arith.constant 0 : index
    %1 = vector.load %arg3[%c0_1, %c0_2] : memref<48x128xf32, #tpu.memory_space<vmem>>, vector<48x128xf32>
    %cst = arith.constant dense<0.000000e+00> : vector<8x128xf32>
    %2 = tpu.matmul %0, %1, %cst {dimension_numbers = #tpu.dot_dimension_numbers<[1], [0], [0], [1], [0, 0, 1, 1], [], []>} : vector<8x48xf32>, vector<48x128xf32>, vector<8x128xf32> -> vector<8x128xf32>
    %c0_3 = arith.constant 0 : index
    %c0_4 = arith.constant 0 : index
    %3 = vector.load %arg4[%c0_3, %c0_4] : memref<1x128xf32, #tpu.memory_space<vmem>>, vector<1x128xf32>
    %4 = vector.broadcast %3 : vector<1x128xf32> to vector<8x128xf32>
    %5 = arith.addf %2, %4 : vector<8x128xf32>
    %c0_5 = arith.constant 0 : index
    %c0_6 = arith.constant 0 : index
    %6 = vector.load %arg2[%c0_5, %c0_6] : memref<8x32xf32, #tpu.memory_space<vmem>>, vector<8x32xf32>
    %7 = vector.extract_strided_slice %5 {offsets = [0, 0], sizes = [8, 32], strides = [1, 1]} : vector<8x128xf32> to vector<8x32xf32>
    %8 = arith.negf %7 : vector<8x32xf32>
    %9 = math.exp %8 : vector<8x32xf32>
    %cst_7 = arith.constant 1.000000e+00 : f32
    %10 = vector.broadcast %cst_7 : f32 to vector<8x32xf32>
    %11 = arith.addf %10, %9 : vector<8x32xf32>
    %12 = arith.divf %10, %11 : vector<8x32xf32>
    %13 = vector.extract_strided_slice %5 {offsets = [0, 32], sizes = [8, 32], strides = [1, 1]} : vector<8x128xf32> to vector<8x32xf32>
    %14 = arith.negf %13 : vector<8x32xf32>
    %15 = math.exp %14 : vector<8x32xf32>
    %cst_8 = arith.constant 1.000000e+00 : f32
    %16 = vector.broadcast %cst_8 : f32 to vector<8x32xf32>
    %17 = arith.addf %16, %15 : vector<8x32xf32>
    %18 = arith.divf %16, %17 : vector<8x32xf32>
    %19 = vector.extract_strided_slice %5 {offsets = [0, 64], sizes = [8, 32], strides = [1, 1]} : vector<8x128xf32> to vector<8x32xf32>
    %20 = math.tanh %19 : vector<8x32xf32>
    %21 = vector.extract_strided_slice %5 {offsets = [0, 96], sizes = [8, 32], strides = [1, 1]} : vector<8x128xf32> to vector<8x32xf32>
    %22 = arith.negf %21 : vector<8x32xf32>
    %23 = math.exp %22 : vector<8x32xf32>
    %cst_9 = arith.constant 1.000000e+00 : f32
    %24 = vector.broadcast %cst_9 : f32 to vector<8x32xf32>
    %25 = arith.addf %24, %23 : vector<8x32xf32>
    %26 = arith.divf %24, %25 : vector<8x32xf32>
    %27 = arith.mulf %6, %12 : vector<8x32xf32>
    %28 = arith.mulf %18, %20 : vector<8x32xf32>
    %29 = arith.addf %27, %28 : vector<8x32xf32>
    %c0_10 = arith.constant 0 : index
    %c0_11 = arith.constant 0 : index
    %30 = vector.load %arg5[%c0_10, %c0_11] : memref<8x32xf32, #tpu.memory_space<vmem>>, vector<8x32xf32>
    tpu.vector_store %arg5[%c0_10, %c0_11], %29 {strides = array<i32>} : memref<8x32xf32, #tpu.memory_space<vmem>>, vector<8x32xf32>,
    %31 = math.tanh %29 : vector<8x32xf32>
    %32 = arith.mulf %31, %26 : vector<8x32xf32>
    %c0_12 = arith.constant 0 : index
    %c0_13 = arith.constant 0 : index
    %33 = vector.load %arg6[%c0_12, %c0_13] : memref<8x32xf32, #tpu.memory_space<vmem>>, vector<8x32xf32>
    tpu.vector_store %arg6[%c0_12, %c0_13], %32 {strides = array<i32>} : memref<8x32xf32, #tpu.memory_space<vmem>>, vector<8x32xf32>,
    return
  }
  func.func @transform_0(%arg0: i32) -> (i32, i32) {
    %c0_i32 = arith.constant 0 : i32
    %c0_i32_0 = arith.constant 0 : i32
    return %arg0, %c0_i32 : i32, i32
  }
  func.func @transform_1(%arg0: i32) -> (i32, i32) {
    %c0_i32 = arith.constant 0 : i32
    %c0_i32_0 = arith.constant 0 : i32
    return %arg0, %c0_i32 : i32, i32
  }
  func.func @transform_2(%arg0: i32) -> (i32, i32) {
    %c0_i32 = arith.constant 0 : i32
    %c0_i32_0 = arith.constant 0 : i32
    %c0_i32_1 = arith.constant 0 : i32
    return %c0_i32, %c0_i32_0 : i32, i32
  }
  func.func @transform_3(%arg0: i32) -> (i32, i32) {
    %c0_i32 = arith.constant 0 : i32
    %c0_i32_0 = arith.constant 0 : i32
    %c0_i32_1 = arith.constant 0 : i32
    return %c0_i32, %c0_i32_0 : i32, i32
  }
  func.func @transform_4(%arg0: i32) -> (i32, i32) {
    %c0_i32 = arith.constant 0 : i32
    %c0_i32_0 = arith.constant 0 : i32
    return %arg0, %c0_i32 : i32, i32
  }
  func.func @transform_5(%arg0: i32) -> (i32, i32) {
    %c0_i32 = arith.constant 0 : i32
    %c0_i32_0 = arith.constant 0 : i32
    return %arg0, %c0_i32 : i32, i32
  }
}

</mosaic_0001>

<llo_original>
// kernel: lstm_cell_pallas.1
$region0: #{lstm_cell_pallas.1}
  #allocation0 [shape = 'u32[]', space=smem, size = 0x4, offset = 0x4, fixed_abs, tag = 'smem constant byte address 0x4 - core index']
  #allocation1 [shape = 'u32[144,128]{1,0:T(1,128)}', space=vmem, size = 0x12000, scoped, tag = 'internal scratch']
  %s0 = inlined_call_operand.vmem [shape: f32[8,48], index: 0, kind: input, shape index: {}]
  %s1 = inlined_call_operand.vmem [shape: f32[8,32], index: 1, kind: input, shape index: {}]
  %s2 = inlined_call_operand.hbm [shape: f32[48,128], index: 2, kind: input, shape index: {}]
  %s3 = inlined_call_operand.vmem [shape: f32[1,128], index: 3, kind: input, shape index: {}]
  %s4 = inlined_call_operand.hbm [shape: f32[8,32], index: 4, kind: output, shape index: {0}]
  %s5 = inlined_call_operand.hbm [shape: f32[8,32], index: 5, kind: output, shape index: {1}]
  %6 = xla_tuple %s4, %s5
  %s7 = sld [smem:[#allocation0]]
  $region38: #{lstm_cell_pallas.1} parent=0
    _
  %s9 = ssub.s32 1, %s7
  %s10 = scalar_select 0, %s9, %s7
  $region1: #{lstm_cell_pallas.1} parent=0
    #allocation2 [shape = 'u8[24576]{0}', space=vmem, size = 0x6000, scoped, tag = 'input window, operand 2, single buffered']
    #allocation3 [shape = 's32[1]{0}', space=sflag, size = 0x4, scoped, tag = 'scoped memory for lstm_cell_pallas.1']
    #allocation4 [shape = 's32[1]{0}', space=sflag, size = 0x4, scoped, tag = 'scoped memory for lstm_cell_pallas.1']
    #allocation5 [shape = 'u8[4096]{0}', space=vmem, size = 0x1000, scoped, tag = 'output window, operand 0, single buffered']
    #allocation6 [shape = 'u8[4096]{0}', space=vmem, size = 0x1000, scoped, tag = 'output window, operand 1, single buffered']
    #allocation7 [shape = 's32[1]{0}', space=sflag, size = 0x4, scoped, tag = 'scoped memory for lstm_cell_pallas.1']
    %11 = vsyncpa [#allocation3], 0
    %12 = vsyncpa [#allocation4], 0
    %13 = vsyncpa [#allocation7], 0
    // Predicated region
    $region2: #{lstm_cell_pallas.1} parent=1 // pred_check
      _
    $region3: #{lstm_cell_pallas.1} parent=1 // pred_check_branch
      %15 = sbr.rel (0) target = $region5
    $region4: #{lstm_cell_pallas.1} parent=1 // pred_region
      _
    $region5: #{lstm_cell_pallas.1} parent=1 // pred_fallthru
      _
    // Predicated region
    $region6: #{lstm_cell_pallas.1} parent=1 // pred_check
      _
    $region7: #{lstm_cell_pallas.1} parent=1 // pred_check_branch
      %17 = sbr.rel (0) target = $region9
    $region8: #{lstm_cell_pallas.1} parent=1 // pred_region
      _
    $region9: #{lstm_cell_pallas.1} parent=1 // pred_fallthru
      _
    // Predicated region
    $region10: #{lstm_cell_pallas.1} parent=1 // pred_check
      _
    $region11: #{lstm_cell_pallas.1} parent=1 // pred_check_branch
      %19 = sbr.rel (0) target = $region13
    $region12: #{lstm_cell_pallas.1} parent=1 // pred_region
      %s21 = ssub.s32 768, 768
      %22 = vsyncadd [#allocation3], %s21
      %s23 = sshll.u32 [#allocation2], 4
      %s24 = int_to_ptr.vmem [resolvable:$true] %s23
      %29 = dma.hbm_to_vmem [thread:$0]  %s2, 768, %s24, [#allocation3], 128, 128, 8
    $region13: #{lstm_cell_pallas.1} parent=1 // pred_fallthru
      _
    // Predicated region
    $region14: #{lstm_cell_pallas.1} parent=1 // pred_check
      _
    $region15: #{lstm_cell_pallas.1} parent=1 // pred_check_branch
      %31 = sbr.rel (0) target = $region17
    $region16: #{lstm_cell_pallas.1} parent=1 // pred_region
      _
    $region17: #{lstm_cell_pallas.1} parent=1 // pred_fallthru
      _
    // Predicated region
    $region18: #{lstm_cell_pallas.1} parent=1 // pred_check
      _
    $region19: #{lstm_cell_pallas.1} parent=1 // pred_check_branch
      %33 = sbr.rel (0) target = $region21
    $region20: #{lstm_cell_pallas.1} parent=1 // pred_region
      %34 = dma.done [#allocation3], 768
    $region21: #{lstm_cell_pallas.1} parent=1 // pred_fallthru
      _
    %v35 = vld [vmem:[%s0] sm:$0xff]
    %v36 = vld [vmem:[#allocation2] sm:$0xff]
    %v37 = vld [vmem:[#allocation2 + $0x8] sm:$0xff]
    %v38 = vld [vmem:[#allocation2 + $0x10] sm:$0xff]
    %v39 = vld [vmem:[#allocation2 + $0x18] sm:$0xff]
    %v40 = vld [vmem:[#allocation2 + $0x20] sm:$0xff]
    %v41 = vld [vmem:[#allocation2 + $0x28] sm:$0xff]
    %v42 = vld [vmem:[%s3] sm:$0x1]
    %v44 = vlaneseq
    %v45 = vshrl.u32 %v44, 7
    %v46 = vsub.s32 0, %v45
    %v47 = vrot.slane %v42, %v46
    %vm49 = vcmask 392192
    %v51 = vsel %vm49, %v35, 0
    %53 = vmatprep.subr.mxu0 0.0
    %54 = vmatpush1.msra.mxu0 0.0
    %55 = vmatprep.subr.mxu0 0.0
    %56 = vmatpush1.msra.mxu0 0.0
    %57 = vmatprep.subr.mxu0 0.0
    %58 = vmatpush1.msra.mxu0 0.0
    %59 = vmatprep.subr.mxu0 0.0
    %60 = vmatpush1.msra.mxu0 0.0
    %61 = vmatprep.subr.mxu0 0.0
    %62 = vmatpush1.msra.mxu0 0.0
    %63 = vmatprep.subr.mxu0 0.0
    %64 = vmatpush1.msra.mxu0 0.0
    %65 = vmatprep.subr.mxu0 0.0
    %66 = vmatpush1.msra.mxu0 0.0
    %67 = vmatprep.subr.mxu0 0.0
    %68 = vmatpush1.msra.mxu0 0.0
    %69 = vmatprep.subr.mxu0 0.0
    %70 = vmatpush1.msra.mxu0 0.0
    %71 = vmatprep.subr.mxu0 0.0
    %72 = vmatpush1.msra.mxu0 0.0
    %73 = vmatprep.subr.mxu0 0.0
    %74 = vmatpush1.msra.mxu0 %v41
    %75 = vmatprep.subr.mxu0 0.0
    %76 = vmatpush1.msra.mxu0 %v40
    %77 = vmatprep.subr.mxu0 0.0
    %78 = vmatpush1.msra.mxu0 %v39
    %79 = vmatprep.subr.mxu0 0.0
    %80 = vmatpush1.msra.mxu0 %v38
    %81 = vmatprep.subr.mxu0 0.0
    %82 = vmatpush1.msra.mxu0 %v37
    %83 = vmatprep.subr.mxu0 0.0
    %84 = vmatpush1.msra.mxu0 %v36
    %85 = vmatprep.subr.mxu0 0.0
    %86 = vmatpush2.msra.mxu0 0.0
    %87 = vmatprep.subr.mxu0 0.0
    %88 = vmatpush2.msra.mxu0 0.0
    %89 = vmatprep.subr.mxu0 0.0
    %90 = vmatpush2.msra.mxu0 0.0
    %91 = vmatprep.subr.mxu0 0.0
    %92 = vmatpush2.msra.mxu0 0.0
    %93 = vmatprep.subr.mxu0 0.0
    %94 = vmatpush2.msra.mxu0 0.0
    %95 = vmatprep.subr.mxu0 0.0
    %96 = vmatpush2.msra.mxu0 0.0
    %97 = vmatprep.subr.mxu0 0.0
    %98 = vmatpush2.msra.mxu0 0.0
    %99 = vmatprep.subr.mxu0 0.0
    %100 = vmatpush2.msra.mxu0 0.0
    %101 = vmatprep.subr.mxu0 0.0
    %102 = vmatpush2.msra.mxu0 0.0
    %103 = vmatprep.subr.mxu0 0.0
    %104 = vmatpush2.msra.mxu0 0.0
    %105 = vmatprep.subr.mxu0 0.0
    %106 = vmatpush2.msra.mxu0 0.0
    %107 = vmatprep.subr.mxu0 0.0
    %108 = vmatpush2.msra.mxu0 0.0
    %109 = vmatprep.subr.mxu0 0.0
    %110 = vmatpush2.msra.mxu0 0.0
    %111 = vmatprep.subr.mxu0 0.0
    %112 = vmatpush2.msra.mxu0 0.0
    %113 = vmatprep.subr.mxu0 0.0
    %114 = vmatpush2.msra.mxu0 0.0
    %115 = vmatprep.subr.mxu0 0.0
    %116 = vmatpush2.msra.mxu0 0.0
    %117 = vmatprep.mubr.f32.mxu0 0.0
    %118 = vmatmul.mubr.f32.gmra.mxu0 %v51
    %v119 = vpop.f32.mrf.mxu0
    %v120 = vadd.f32 %v47, %v119
    %v121 = vpop.f32.mrf.mxu0
    %122 = vdwg.mxu0
    %v123 = vld [vmem:[%s1] sm:$0xff]
    %v124 = vxor.u32 %v120, 2147483648
    %v125 = vmul.f32 %v124, 1.442695
    %v126 = vpow.pop %v125
    %v127 = vadd.f32 %v126, 1.0
    %v128 = vrcp.pop %v127
    %v129 = vmul.f32 1.0, %v128
    %v130 = vtanh.pop %v120
    %v131 = vmul.f32 %v123, %v129
    %133 = vrot.lane.b32.xlu0 %v130, 96
    %v134 = vpop.permute.xlu0 %133
    %v136 = vmul.f32 %v129, %v134
    %138 = vrot.lane.b32.xlu0 %v136, 96
    %v139 = vpop.permute.xlu0 %138
    %v141 = vadd.f32 %v131, %v139
    %vm142 = vcmask 261120
    %143 = vst.msk [vmem:[#allocation5] sm:$0xff] %vm142, %v141
    %v144 = vtanh.pop %v141
    %146 = vrot.lane.b32.xlu0 %v129, 32
    %v147 = vpop.permute.xlu0 %146
    %v149 = vmul.f32 %v144, %v147
    %150 = vst.msk [vmem:[#allocation6] sm:$0xff] %vm142, %v149
    // Predicated region
    $region22: #{lstm_cell_pallas.1} parent=1 // pred_check
      _
    $region23: #{lstm_cell_pallas.1} parent=1 // pred_check_branch
      %152 = sbr.rel (0) target = $region25
    $region24: #{lstm_cell_pallas.1} parent=1 // pred_region
      %s154 = ssub.s32 128, 128
      %155 = vsyncadd [#allocation4], %s154
      %s157 = sshll.u32 [#allocation5], 4
      %s158 = int_to_ptr.vmem [resolvable:$true] %s157
      %160 = dma.vmem_to_hbm [thread:$0]  %s158, 128, %s4, [#allocation4]
    $region25: #{lstm_cell_pallas.1} parent=1 // pred_fallthru
      _
    // Predicated region
    $region26: #{lstm_cell_pallas.1} parent=1 // pred_check
      _
    $region27: #{lstm_cell_pallas.1} parent=1 // pred_check_branch
      %162 = sbr.rel (0) target = $region29
    $region28: #{lstm_cell_pallas.1} parent=1 // pred_region
      %s164 = ssub.s32 128, 128
      %165 = vsyncadd [#allocation7], %s164
      %s167 = sshll.u32 [#allocation6], 4
      %s168 = int_to_ptr.vmem [resolvable:$true] %s167
      %170 = dma.vmem_to_hbm [thread:$0]  %s168, 128, %s5, [#allocation7]
    $region29: #{lstm_cell_pallas.1} parent=1 // pred_fallthru
      _
    // Predicated region
    $region30: #{lstm_cell_pallas.1} parent=1 // pred_check
      _
    $region31: #{lstm_cell_pallas.1} parent=1 // pred_check_branch
      %172 = sbr.rel (0) target = $region33
    $region32: #{lstm_cell_pallas.1} parent=1 // pred_region
      %173 = dma.done [#allocation4], 128
    $region33: #{lstm_cell_pallas.1} parent=1 // pred_fallthru
      _
    // Predicated region
    $region34: #{lstm_cell_pallas.1} parent=1 // pred_check
      _
    $region35: #{lstm_cell_pallas.1} parent=1 // pred_check_branch
      %175 = sbr.rel (0) target = $region37
    $region36: #{lstm_cell_pallas.1} parent=1 // pred_region
      %176 = dma.done [#allocation7], 128
    $region37: #{lstm_cell_pallas.1} parent=1 // pred_fallthru
      _
    %177 = vsyncpa [#allocation3], 1
    %178 = vsyncpa [#allocation4], 1
    %179 = vsyncpa [#allocation7], 1

</llo_original>
